<compile_context>
chip_gen: v6e
topology: v6e:2x2x1
jax: 0.10.0
libtpu: 0.0.40
codegen_flags: <defaults>
</compile_context>

<pallas_src>
import functools

import numpy as np
import jax
import jax.numpy as jnp
from jax.experimental import pallas as pl
from jax.experimental.pallas import tpu as pltpu


# ----------------------------------------------------------------------------
# Small shape helpers (host-side glue).
# ----------------------------------------------------------------------------
def _round_up(x, m):
    return (x + m - 1) // m * m


def _pad_to(x, shape):
    return jnp.pad(x, [(0, s - d) for d, s in zip(x.shape, shape)])


def _largest_dividing_tile(n_pad, pref):
    """Largest multiple of 128 <= pref that divides n_pad (n_pad % 128 == 0)."""
    t = max(128, min(pref, n_pad))
    t -= t % 128
    while n_pad % t:
        t -= 128
    return t


def _pick_tiles(n, tm_pref, tk_pref):
    """Pad N so large tiles always divide it (never degrade to 128 tiles)."""
    n128 = _round_up(n, 128)
    base = min(512, n128)           # <= 511 rows/cols of zero padding for big N
    n_pad = _round_up(n128, base)
    tm = _largest_dividing_tile(n_pad, tm_pref)
    tk = _largest_dividing_tile(n_pad, tk_pref)
    return n_pad, tm, tk


def _vmem_limit_bytes():
    """Scoped-VMEM limit with headroom, derived from the actual device."""
    cap = 64 * 1024 * 1024                      # conservative fallback (v7x TC)
    try:
        cap = int(pltpu.get_tpu_info().vmem_capacity_bytes)
    except Exception:
        pass
    # 48 MiB on a 64 MiB/TC v7x, 96 MiB on 128 MiB v5e/v6e.
    return int(min(cap * 3 // 4, 100 * 1024 * 1024))


# ----------------------------------------------------------------------------
# Pallas kernel: one GCN aggregation stage = tanh(A @ XW + bcat), followed by
# the elementwise product of the n_branches lane-padded branch slices.
# ----------------------------------------------------------------------------
def _gcn_agg_kernel(a_ref, xw_ref, b_ref, out_ref, acc_ref,
                    *, n_branches, branch_pad):
    k = pl.program_id(1)

    @pl.when(k == 0)
    def _init():
        acc_ref[...] = jnp.zeros_like(acc_ref)

    # A (bf16) @ XW (bf16) on the MXU with f32 accumulation in VMEM scratch.
    acc_ref[...] += jnp.dot(a_ref[...], xw_ref[...],
                            preferred_element_type=jnp.float32)

    @pl.when(k == pl.num_programs(1) - 1)
    def _finalize():
        h = jnp.tanh(acc_ref[...] + b_ref[...])       # bias add once per row tile
        prod = h[:, 0:branch_pad]
        for br in range(1, n_branches):                # static unroll (<=3)
            prod = prod * h[:, br * branch_pad:(br + 1) * branch_pad]
        out_ref[...] = prod.astype(out_ref.dtype)      # lane-dense (mult. of 128)


def _gcn_stage(a_bf16, xw_bf16, b_cat, *, n_branches, branch_pad, tm, tk,
               out_dtype, vmem_limit):
    n_pad = a_bf16.shape[0]
    fcat = xw_bf16.shape[1]
    grid = (n_pad // tm, n_pad // tk)

    kernel = functools.partial(_gcn_agg_kernel, n_branches=n_branches,
                               branch_pad=branch_pad)
    out_bytes = jnp.dtype(out_dtype).itemsize
    cost = pl.CostEstimate(
        flops=2 * n_pad * n_pad * fcat,
        transcendentals=n_pad * fcat,
        bytes_accessed=int(a_bf16.size) * 2              # A streamed once
                       + int(xw_bf16.size) * 2 * grid[0]  # XW re-read per row tile
                       + int(b_cat.size) * 4
                       + n_pad * branch_pad * out_bytes,
    )

    return pl.pallas_call(
        kernel,
        out_shape=jax.ShapeDtypeStruct((n_pad, branch_pad), out_dtype),
        grid_spec=pltpu.PrefetchScalarGridSpec(
            num_scalar_prefetch=0,
            grid=grid,
            in_specs=[
                pl.BlockSpec((tm, tk), lambda i, k: (i, k)),       # A_hat tile
                pl.BlockSpec((tk, fcat), lambda i, k: (k, 0)),     # XW slab
                pl.BlockSpec((1, fcat), lambda i, k: (0, 0)),      # bias (resident)
            ],
            out_specs=pl.BlockSpec((tm, branch_pad), lambda i, k: (i, 0)),
            scratch_shapes=[pltpu.VMEM((tm, fcat), jnp.float32)],
        ),
        compiler_params=pltpu.CompilerParams(
            dimension_semantics=("parallel", "arbitrary"),
            vmem_limit_bytes=vmem_limit,
        ),
        cost_estimate=cost,
    )(a_bf16, xw_bf16, b_cat)


# ----------------------------------------------------------------------------
# Full ENC_DEC forward: 3 pipelined Pallas stages (A streamed 3x, not 6x).
# ----------------------------------------------------------------------------
def enc_dec_forward(a_hat, h0, params, hidden_channels, embedding_dim,
                    *, tm_pref=1024, tk_pref=2048):
    (w1, b1), (w2, b2), (w3, b3), (w4, b4), (w5, b5), (w6, b6) = params
    n, f_in = h0.shape

    n_pad, tm, tk = _pick_tiles(n, tm_pref, tk_pref)
    vmem_limit = _vmem_limit_bytes()

    # Per-branch lane-padded widths (multiples of 128 -> clean vreg splits,
    # unmasked stores; zero pads propagate as exact zeros through tanh/products).
    bp1 = _round_up(hidden_channels[0], 128)
    bp2 = _round_up(hidden_channels[1], 128)
    bp3 = _round_up(embedding_dim, 128)

    # Concatenate the parallel-branch weights along the output-feature axis so
    # each stage does ONE X@W matmul and ONE A@XW matmul.
    w123 = jnp.concatenate([_pad_to(w, (f_in, bp1)) for w in (w1, w2, w3)],
                           axis=1).astype(jnp.bfloat16)
    b123 = jnp.concatenate([_pad_to(b, (1, bp1)) for b in (b1, b2, b3)], axis=1)
    w45 = jnp.concatenate([_pad_to(w, (bp1, bp2)) for w in (w4, w5)],
                          axis=1).astype(jnp.bfloat16)
    b45 = jnp.concatenate([_pad_to(b, (1, bp2)) for b in (b4, b5)], axis=1)
    w6p = _pad_to(w6, (bp2, bp3)).astype(jnp.bfloat16)
    b6p = _pad_to(b6, (1, bp3))

    # bf16 A_hat halves HBM/VMEM traffic on the dominant operand; cast BEFORE
    # padding so no extra f32 N^2 round trip.  Accumulation stays f32.
    a_bf16 = _pad_to(a_hat.astype(jnp.bfloat16), (n_pad, n_pad))
    h0_bf16 = _pad_to(h0, (n_pad, f_in)).astype(jnp.bfloat16)

    def xw(x_bf16, w_bf16):
        # Small (N x fcat) matmul hoisted out of the Pallas grid: done once
        # per stage in XLA (bf16 operands, f32 accumulation), fed as bf16.
        return jnp.dot(x_bf16, w_bf16,
                       preferred_element_type=jnp.float32).astype(jnp.bfloat16)

    stage = functools.partial(_gcn_stage, a_bf16, tm=tm, tk=tk,
                              vmem_limit=vmem_limit)

    h123 = stage(xw(h0_bf16, w123), b123,
                 n_branches=3, branch_pad=bp1, out_dtype=jnp.bfloat16)
    h45 = stage(xw(h123, w45), b45,
                n_branches=2, branch_pad=bp2, out_dtype=jnp.bfloat16)
    h6 = stage(xw(h45, w6p), b6p,
               n_branches=1, branch_pad=bp3, out_dtype=jnp.float32)
    return h6[:n, :embedding_dim]


# ----------------------------------------------------------------------------
# Glue: dense GCN normalization (matches PyG gcn_norm for graphs WITHOUT
# pre-existing self-loops; PyG's add_remaining_self_loops would skip nodes
# that already carry one).
# TODO(synk): for very large sparse graphs a blocked-sparse / gather
# formulation would replace this dense [N, N] operator.
# ----------------------------------------------------------------------------
def build_normalized_adjacency(edge_index, edge_weight, n_nodes):
    src = edge_index[0]
    dst = edge_index[1]
    A = jnp.zeros((n_nodes, n_nodes), dtype=jnp.float32)
    A = A.at[dst, src].add(edge_weight.reshape(-1))      # aggregate at target node
    A = A + jnp.eye(n_nodes, dtype=jnp.float32)          # self loops (fill=1.0)
    deg = jnp.sum(A, axis=1)
    dinv = jnp.where(deg > 0, 1.0 / jnp.sqrt(deg), 0.0)
    return dinv[:, None] * A * dinv[None, :]


def glorot(key, fan_in, fan_out):
    limit = float(np.sqrt(6.0 / (fan_in + fan_out)))
    return jax.random.uniform(key, (fan_in, fan_out), jnp.float32,
                              minval=-limit, maxval=limit)


def make_params(key, in_features, hidden_channels, embedding_dim):
    dims = [
        (in_features, hidden_channels[0]),          # enc_block1_1
        (in_features, hidden_channels[0]),          # enc_block2_1
        (in_features, hidden_channels[0]),          # enc_block3_1
        (hidden_channels[0], hidden_channels[1]),   # enc_block4_2
        (hidden_channels[0], hidden_channels[1]),   # enc_block5_2
        (hidden_channels[1], embedding_dim),        # enc_block6_3
    ]
    params = []
    for k, (fi, fo) in zip(jax.random.split(key, len(dims)), dims):
        params.append((glorot(k, fi, fo), jnp.zeros((1, fo), jnp.float32)))
    return params


# ----------------------------------------------------------------------------
# Pure-JAX float32 reference (independent sanity check).
# ----------------------------------------------------------------------------
def enc_dec_reference(a_hat, h0, params):
    def gcn_tanh(x, w, b):
        return jnp.tanh(a_hat @ (x @ w) + b)
    (w1, b1), (w2, b2), (w3, b3), (w4, b4), (w5, b5), (w6, b6) = params
    h1 = gcn_tanh(h0, w1, b1)
    h2 = gcn_tanh(h0, w2, b2)
    h3 = gcn_tanh(h0, w3, b3)
    h123 = h1 * h2 * h3
    h4 = gcn_tanh(h123, w4, b4)
    h5 = gcn_tanh(h123, w5, b5)
    return gcn_tanh(h4 * h5, w6, b6)


if __name__ == "__main__":
    # Small deterministic problem (N=200 exercises padding).  We run both the
    # small-tile config (128 -> 2x2 grid: exercises the K-reduction
    # init/finalize path) and the default large-tile config.
    n_nodes = 200
    in_features = 4
    hidden_channels = [32, 16]
    embedding_dim = 8

    key = jax.random.PRNGKey(0)
    k_feat, k_ew, k_param = jax.random.split(key, 3)

    # Synthetic graph (stand-in for edge_index.dat / edge_weight.dat):
    # a directed ring plus a skip connection (no pre-existing self-loops).
    src = np.arange(n_nodes, dtype=np.int32)
    dst = (src + 1) % n_nodes
    src2 = np.arange(n_nodes, dtype=np.int32)
    dst2 = (src2 + 5) % n_nodes
    edge_index = jnp.asarray(
        np.stack([np.concatenate([src, src2]),
                  np.concatenate([dst, dst2])], axis=0), dtype=jnp.int32)
    n_edges = edge_index.shape[1]
    edge_weight = jax.random.uniform(k_ew, (n_edges, 1), jnp.float32,
                                     minval=0.1, maxval=1.0)

    h0 = jax.random.normal(k_feat, (n_nodes, in_features), jnp.float32)
    params = make_params(k_param, in_features, hidden_channels, embedding_dim)
    a_hat = build_normalized_adjacency(edge_index, edge_weight, n_nodes)

    ref = enc_dec_reference(a_hat, h0, params)

    out_small = jax.block_until_ready(
        enc_dec_forward(a_hat, h0, params, hidden_channels, embedding_dim,
                        tm_pref=128, tk_pref=128))
    out_big = jax.block_until_ready(
        enc_dec_forward(a_hat, h0, params, hidden_channels, embedding_dim))

    # bf16 A_hat / XW / intermediates (f32 accumulation) => loosened tolerance.
    np.testing.assert_allclose(np.asarray(out_small), np.asarray(ref),
                               rtol=5e-2, atol=5e-2)
    np.testing.assert_allclose(np.asarray(out_big), np.asarray(ref),
                               rtol=5e-2, atol=5e-2)
    print("KERNEL_OK")
</pallas_src>

<mosaic_0001>
module attributes {stable_mosaic.version = 11 : i64} {
  func.func @_gcn_agg_kernel(%arg0: i32, %arg1: i32, %arg2: memref<128x128xbf16, #tpu.memory_space<vmem>>, %arg3: memref<128x384xbf16, #tpu.memory_space<vmem>>, %arg4: memref<1x384xf32, #tpu.memory_space<vmem>>, %arg5: memref<128x128xbf16, #tpu.memory_space<vmem>>, %arg6: memref<128x384xf32, #tpu.memory_space<vmem>>) attributes {dimension_semantics = [#tpu.dimension_semantics<parallel>, #tpu.dimension_semantics<arbitrary>], iteration_bounds = array<i64: 2, 2>, scalar_prefetch = 0 : i64, scratch_operands = 1 : i64, tpu.core_type = #tpu.core_type<tc>, window_params = [{transform_indices = @transform_0, window_bounds = array<i64: 128, 128>}, {transform_indices = @transform_1, window_bounds = array<i64: 128, 384>}, {pipeline_mode = #tpu.pipeline_mode<synchronous>, transform_indices = @transform_2, window_bounds = array<i64: 1, 384>}, {transform_indices = @transform_3, window_bounds = array<i64: 128, 128>}]} {
    %c0_i32 = arith.constant 0 : i32
    %0 = arith.cmpi eq, %arg1, %c0_i32 : i32
    %1 = arith.extui %0 : i1 to i32
    %c0_i32_0 = arith.constant 0 : i32
    %2 = arith.cmpi ne, %1, %c0_i32_0 : i32
    scf.if %2 {
      %cst_9 = arith.constant 0.000000e+00 : f32
      %12 = vector.broadcast %cst_9 : f32 to vector<128x384xf32>
      %c0_10 = arith.constant 0 : index
      %c0_11 = arith.constant 0 : index
      %13 = vector.load %arg6[%c0_10, %c0_11] : memref<128x384xf32, #tpu.memory_space<vmem>>, vector<128x384xf32>
      tpu.vector_store %arg6[%c0_10, %c0_11], %12 {strides = array<i32>} : memref<128x384xf32, #tpu.memory_space<vmem>>, vector<128x384xf32>,
    } else {
    }
    %c0 = arith.constant 0 : index
    %c0_1 = arith.constant 0 : index
    %3 = vector.load %arg6[%c0, %c0_1] : memref<128x384xf32, #tpu.memory_space<vmem>>, vector<128x384xf32>
    %c0_2 = arith.constant 0 : index
    %c0_3 = arith.constant 0 : index
    %4 = vector.load %arg2[%c0_2, %c0_3] : memref<128x128xbf16, #tpu.memory_space<vmem>>, vector<128x128xbf16>
    %c0_4 = arith.constant 0 : index
    %c0_5 = arith.constant 0 : index
    %5 = vector.load %arg3[%c0_4, %c0_5] : memref<128x384xbf16, #tpu.memory_space<vmem>>, vector<128x384xbf16>
    %cst = arith.constant dense<0.000000e+00> : vector<128x384xf32>
    %6 = tpu.matmul %4, %5, %cst {dimension_numbers = #tpu.dot_dimension_numbers<[1], [0], [0], [1], [0, 0, 1, 1], [], []>} : vector<128x128xbf16>, vector<128x384xbf16>, vector<128x384xf32> -> vector<128x384xf32>
    %7 = arith.addf %3, %6 : vector<128x384xf32>
    %c0_6 = arith.constant 0 : index
    %c0_7 = arith.constant 0 : index
    %8 = vector.load %arg6[%c0_6, %c0_7] : memref<128x384xf32, #tpu.memory_space<vmem>>, vector<128x384xf32>
    tpu.vector_store %arg6[%c0_6, %c0_7], %7 {strides = array<i32>} : memref<128x384xf32, #tpu.memory_space<vmem>>, vector<128x384xf32>,
    %c1_i32 = arith.constant 1 : i32
    %9 = arith.cmpi eq, %arg1, %c1_i32 : i32
    %10 = arith.extui %9 : i1 to i32
    %c0_i32_8 = arith.constant 0 : i32
    %11 = arith.cmpi ne, %10, %c0_i32_8 : i32
    scf.if %11 {
      %c0_9 = arith.constant 0 : index
      %c0_10 = arith.constant 0 : index
      %12 = vector.load %arg6[%c0_9, %c0_10] : memref<128x384xf32, #tpu.memory_space<vmem>>, vector<128x384xf32>
      %c0_11 = arith.constant 0 : index
      %c0_12 = arith.constant 0 : index
      %13 = vector.load %arg4[%c0_11, %c0_12] : memref<1x384xf32, #tpu.memory_space<vmem>>, vector<1x384xf32>
      %14 = vector.broadcast %13 : vector<1x384xf32> to vector<128x384xf32>
      %15 = arith.addf %12, %14 : vector<128x384xf32>
      %16 = math.tanh %15 : vector<128x384xf32>
      %17 = vector.extract_strided_slice %16 {offsets = [0, 0], sizes = [128, 128], strides = [1, 1]} : vector<128x384xf32> to vector<128x128xf32>
      %18 = vector.extract_strided_slice %16 {offsets = [0, 128], sizes = [128, 128], strides = [1, 1]} : vector<128x384xf32> to vector<128x128xf32>
      %19 = arith.mulf %17, %18 : vector<128x128xf32>
      %20 = vector.extract_strided_slice %16 {offsets = [0, 256], sizes = [128, 128], strides = [1, 1]} : vector<128x384xf32> to vector<128x128xf32>
      %21 = arith.mulf %19, %20 : vector<128x128xf32>
      %22 = arith.truncf %21 : vector<128x128xf32> to vector<128x128xbf16>
      %c0_13 = arith.constant 0 : index
      %c0_14 = arith.constant 0 : index
      %23 = vector.load %arg5[%c0_13, %c0_14] : memref<128x128xbf16, #tpu.memory_space<vmem>>, vector<128x128xbf16>
      tpu.vector_store %arg5[%c0_13, %c0_14], %22 {strides = array<i32>} : memref<128x128xbf16, #tpu.memory_space<vmem>>, vector<128x128xbf16>,
    } else {
    }
    return
  }
  func.func @transform_0(%arg0: i32, %arg1: i32) -> (i32, i32) {
    %c0_i32 = arith.constant 0 : i32
    return %arg0, %arg1 : i32, i32
  }
  func.func @transform_1(%arg0: i32, %arg1: i32) -> (i32, i32) {
    %c0_i32 = arith.constant 0 : i32
    %c0_i32_0 = arith.constant 0 : i32
    return %arg1, %c0_i32 : i32, i32
  }
  func.func @transform_2(%arg0: i32, %arg1: i32) -> (i32, i32) {
    %c0_i32 = arith.constant 0 : i32
    %c0_i32_0 = arith.constant 0 : i32
    %c0_i32_1 = arith.constant 0 : i32
    return %c0_i32, %c0_i32_0 : i32, i32
  }
  func.func @transform_3(%arg0: i32, %arg1: i32) -> (i32, i32) {
    %c0_i32 = arith.constant 0 : i32
    %c0_i32_0 = arith.constant 0 : i32
    return %arg0, %c0_i32 : i32, i32
  }
}

</mosaic_0001>

<llo_original>
// kernel: tpu_custom_call.1
$region0: #{tpu_custom_call.1}
  #allocation0 [shape = 'u32[]', space=smem, size = 0x4, offset = 0x4, fixed_abs, tag = 'smem constant byte address 0x4 - core index']
  #allocation1 [shape = 'u32[144,128]{1,0:T(1,128)}', space=vmem, size = 0x12000, scoped, tag = 'internal scratch']
  #allocation2 [shape = 'f32[128,384]{1,0:T(8,128)}', space=vmem, size = 0x30000, scoped, tag = 'scratch operand']
  %s0 = inlined_call_operand.hbm [shape: bf16[256,256], index: 0, kind: input, shape index: {}]
  %s1 = inlined_call_operand.hbm [shape: bf16[256,384], index: 1, kind: input, shape index: {}]
  %s2 = inlined_call_operand.vmem [shape: f32[1,384], index: 2, kind: input, shape index: {}]
  %s3 = inlined_call_operand.hbm [shape: bf16[256,128], index: 3, kind: output, shape index: {}]
  %s4 = sld [smem:[#allocation0]]
  $region61: #{tpu_custom_call.1} parent=0
    _
  %s6 = ssub.s32 1, %s4
  %s7 = scalar_select 0, %s6, %s4
  $region1: #{tpu_custom_call.1} parent=0
    #allocation3 [shape = 'u8[65536]{0}', space=vmem, size = 0x10000, scoped, tag = 'input window, operand 0']
    #allocation4 [shape = 's32[2]{0}', space=sflag, size = 0x8, scoped, tag = 'scoped memory for tpu_custom_call.1']
    #allocation5 [shape = 's32[2]{0}', space=sflag, size = 0x8, scoped, tag = 'scoped memory for tpu_custom_call.1']
    #allocation6 [shape = 'u8[196608]{0}', space=vmem, size = 0x30000, scoped, tag = 'input window, operand 1']
    #allocation7 [shape = 's32[2]{0}', space=sflag, size = 0x8, scoped, tag = 'scoped memory for tpu_custom_call.1']
    #allocation8 [shape = 'u8[65536]{0}', space=vmem, size = 0x10000, scoped, tag = 'output window, operand 0']
    %8 = vsyncpa [#allocation4], 0
    %s9 = scalar_lea.sflag [#allocation4], 1
    %10 = vsyncpa %s9, 0
    %11 = vsyncpa [#allocation7], 0
    %s12 = scalar_lea.sflag [#allocation7], 1
    %13 = vsyncpa %s12, 0
    %14 = vsyncpa [#allocation5], 0
    %s15 = scalar_lea.sflag [#allocation5], 1
    %16 = vsyncpa %s15, 0
    loop: start=0, step=1, limit=6
    $region2: #{tpu_custom_call.1} parent=1 // loop_pre_header
      _
    $region3: #{tpu_custom_call.1} parent=1 // loop_header
      %s18 = sphi 0, %s22
      %p19 = scmp.ge.s32.totalorder %s18, 6
      %s25 = sphi 0, %s37
      %s26 = sphi 0, %s33
      %s27 = sphi 0, %s25
      %s28 = sphi 0, %s26
      %s29 = sphi 0, %s27
      %s30 = sphi 0, %s28
      %s42 = sphi 0, %s44
      %s45 = sphi 0, %s42
      %s46 = sphi 0, %s45
      %s62 = sphi 0, %s46
      %s68 = sphi 0, %s70
      %s71 = sphi 0, %s68
      %s72 = sphi 0, %s71
      %s88 = sphi 0, %s72
      %s92 = sphi 0, %s92
      %s94 = sphi 0, %s92
      %s95 = sphi 0, %s94
      %s109 = sphi 0, %s95
      %s115 = sphi 0, %s117
      %s118 = sphi 0, %s115
      %s119 = sphi 0, %s118
      %s135 = sphi 0, %s119
    $region4: #{tpu_custom_call.1} parent=1 // loop_header_branch
      %21 = sbr.rel (%p19) target = $region8
    $region5: #{tpu_custom_call.1} parent=1 // loop_body
      %s23 = ssub.s32 %s18, 1
      %s24 = ssub.s32 %s18, 2
      %s31 = sadd.s32 1, %s26
      %p32 = scmp.ge.s32.totalorder %s31, 2
      %s33 = scalar_select %p32, 0, %s31
      %s34 = sadd.s32 1, %s25
      %s35 = scalar_select %p32, %s34, %s25
      %p36 = scmp.ge.s32.totalorder %s35, 2
      %s37 = scalar_select %p36, 0, %s35
      %s38 = ssub.s32 %s25, %s37
      %s39 = ssub.s32 %s26, %s33
      %s40 = sor.u32 %s38, %s39
      %p41 = scmp.eq.s32.totalorder %s40, 0
      %s43 = sadd.s32 %s42, 1
      %s44 = scalar_select %p41, %s42, %s43
      %p47 = pneg %p41
      %p48 = scmp.eq.s32.totalorder %s18, 3
      %p49 = por %p47, %p48
      %p50 = scmp.ne.s32.totalorder %s42, %s45
      %p51 = scmp.eq.s32.totalorder %s18, 0
      %p52 = por %p50, %p51
      %p53 = scmp.ne.s32.totalorder %s42, %s45
      %p54 = scmp.eq.s32.totalorder %s23, 3
      %p55 = por %p53, %p54
      %p56 = scmp.ne.s32.totalorder %s45, %s46
      %p57 = scmp.eq.s32.totalorder %s23, 0
      %p58 = por %p56, %p57
      %p59 = scmp.ne.s32.totalorder %s45, %s46
      %p60 = scmp.eq.s32.totalorder %s24, 3
      %p61 = por %p59, %p60
      %p63 = scmp.ne.s32.totalorder %s46, %s62
      %p64 = scmp.eq.s32.totalorder %s24, 0
      %p65 = por %p63, %p64
      %s66 = ssub.s32 %s26, %s33
      %p67 = scmp.eq.s32.totalorder %s66, 0
      %s69 = sadd.s32 %s68, 1
      %s70 = scalar_select %p67, %s68, %s69
      %p73 = pneg %p67
      %p74 = scmp.eq.s32.totalorder %s18, 3
      %p75 = por %p73, %p74
      %p76 = scmp.ne.s32.totalorder %s68, %s71
      %p77 = scmp.eq.s32.totalorder %s18, 0
      %p78 = por %p76, %p77
      %p79 = scmp.ne.s32.totalorder %s68, %s71
      %p80 = scmp.eq.s32.totalorder %s23, 3
      %p81 = por %p79, %p80
      %p82 = scmp.ne.s32.totalorder %s71, %s72
      %p83 = scmp.eq.s32.totalorder %s23, 0
      %p84 = por %p82, %p83
      %p85 = scmp.ne.s32.totalorder %s71, %s72
      %p86 = scmp.eq.s32.totalorder %s24, 3
      %p87 = por %p85, %p86
      %p89 = scmp.ne.s32.totalorder %s72, %s88
      %p90 = scmp.eq.s32.totalorder %s24, 0
      %p91 = por %p89, %p90
      %s93 = sadd.s32 %s92, 1
      %p96 = scmp.eq.s32.totalorder %s18, 3
      %p97 = scmp.ne.s32.totalorder %s92, %s94
      %p98 = scmp.eq.s32.totalorder %s18, 0
      %p99 = por %p97, %p98
      %p100 = scmp.ne.s32.totalorder %s92, %s94
      %p101 = scmp.eq.s32.totalorder %s23, 3
      %p102 = por %p100, %p101
      %p103 = scmp.ne.s32.totalorder %s94, %s95
      %p104 = scmp.eq.s32.totalorder %s23, 0
      %p105 = por %p103, %p104
      %p106 = scmp.ne.s32.totalorder %s94, %s95
      %p107 = scmp.eq.s32.totalorder %s24, 3
      %p108 = por %p106, %p107
      %p110 = scmp.ne.s32.totalorder %s95, %s109
      %p111 = scmp.eq.s32.totalorder %s24, 0
      %p112 = por %p110, %p111
      %s113 = ssub.s32 %s25, %s37
      %p114 = scmp.eq.s32.totalorder %s113, 0
      %s116 = sadd.s32 %s115, 1
      %s117 = scalar_select %p114, %s115, %s116
      %p120 = pneg %p114
      %p121 = scmp.eq.s32.totalorder %s18, 3
      %p122 = por %p120, %p121
      %p123 = scmp.ne.s32.totalorder %s115, %s118
      %p124 = scmp.eq.s32.totalorder %s18, 0
      %p125 = por %p123, %p124
      %p126 = scmp.ne.s32.totalorder %s115, %s118
      %p127 = scmp.eq.s32.totalorder %s23, 3
      %p128 = por %p126, %p127
      %p129 = scmp.ne.s32.totalorder %s118, %s119
      %p130 = scmp.eq.s32.totalorder %s23, 0
      %p131 = por %p129, %p130
      %p132 = scmp.ne.s32.totalorder %s118, %s119
      %p133 = scmp.eq.s32.totalorder %s24, 3
      %p134 = por %p132, %p133
      %p136 = scmp.ne.s32.totalorder %s119, %s135
      %p137 = scmp.eq.s32.totalorder %s24, 0
      %p138 = por %p136, %p137
      %p139 = scmp.le.s32.totalorder 1, %s18
      %p140 = scmp.lt.s32.totalorder %s18, 5
      %p141 = pnand %p139, %p140
      %p142 = pneg %p141
      // Predicated region
      $region9: #{tpu_custom_call.1} parent=5 // pred_check
        _
      $region10: #{tpu_custom_call.1} parent=5 // pred_check_branch
        %144 = sbr.rel (%p141) target = $region12
      $region11: #{tpu_custom_call.1} parent=5 // pred_region
        %s145 = ssub.s32 %s18, 1
        // Predicated region
        $region13: #{tpu_custom_call.1} parent=11 // pred_check
          %p146 = pneg %p105
        $region14: #{tpu_custom_call.1} parent=11 // pred_check_branch
          %148 = sbr.rel (%p146) target = $region16
        $region15: #{tpu_custom_call.1} parent=11 // pred_region
          _
        $region16: #{tpu_custom_call.1} parent=11 // pred_fallthru
          _
      $region12: #{tpu_custom_call.1} parent=5 // pred_fallthru
        _
      %p149 = scmp.lt.s32.totalorder %s18, 4
      // Predicated region
      $region17: #{tpu_custom_call.1} parent=5 // pred_check
        %p150 = pneg %p149
      $region18: #{tpu_custom_call.1} parent=5 // pred_check_branch
        %152 = sbr.rel (%p150) target = $region20
      $region19: #{tpu_custom_call.1} parent=5 // pred_region
        // Predicated region
        $region21: #{tpu_custom_call.1} parent=19 // pred_check
          %p153 = pneg %p52
        $region22: #{tpu_custom_call.1} parent=19 // pred_check_branch
          %155 = sbr.rel (%p153) target = $region24
        $region23: #{tpu_custom_call.1} parent=19 // pred_region
          %s156 = sand.u32 %s42, 1
          %s157 = scalar_lea.sflag [#allocation4], %s156
          %s158 = sand.u32 %s42, 1
          %s159 = smul.addr %s158, 64
          %s160 = scalar_lea.vmem [#allocation3], %s159
          %s161 = smul.u32 16, %s25
          %s163 = ssub.s32 1024, 1024
          %164 = vsyncadd %s157, %s163
          %s165 = smul.addr %s161, 2
          %s166 = sadd.s32 %s26, %s165
          %s167 = smul.addr %s166, 64
          %s168 = scalar_lea.hbm %s0, %s167
          %s169 = sshll.u32 %s160, 4
          %s170 = int_to_ptr.vmem [resolvable:$true] %s169
          %175 = dma.hbm_to_vmem [thread:$0]  %s168, 1024, %s170, %s157, 128, 64, 4
        $region24: #{tpu_custom_call.1} parent=19 // pred_fallthru
          _
        // Predicated region
        $region25: #{tpu_custom_call.1} parent=19 // pred_check
          %p176 = pneg %p78
        $region26: #{tpu_custom_call.1} parent=19 // pred_check_branch
          %178 = sbr.rel (%p176) target = $region28
        $region27: #{tpu_custom_call.1} parent=19 // pred_region
          %s179 = sand.u32 %s68, 1
          %s180 = scalar_lea.sflag [#allocation7], %s179
          %s181 = sand.u32 %s68, 1
          %s182 = smul.addr %s181, 192
          %s183 = scalar_lea.vmem [#allocation6], %s182
          %s184 = smul.u32 16, %s26
          %s186 = ssub.s32 3072, 3072
          %187 = vsyncadd %s180, %s186
          %s188 = smul.addr %s184, 3
          %s189 = smul.addr %s188, 64
          %s190 = scalar_lea.hbm %s1, %s189
          %s191 = sshll.u32 %s183, 4
          %s192 = int_to_ptr.vmem [resolvable:$true] %s191
          %197 = dma.hbm_to_vmem [thread:$0]  %s190, 3072, %s192, %s180, 192, 192, 12
        $region28: #{tpu_custom_call.1} parent=19 // pred_fallthru
          _
      $region20: #{tpu_custom_call.1} parent=5 // pred_fallthru
        _
      %p198 = scmp.le.s32.totalorder 1, %s18
      %p199 = scmp.lt.s32.totalorder %s18, 5
      %p200 = pnand %p198, %p199
      %p201 = pneg %p200
      // Predicated region
      $region29: #{tpu_custom_call.1} parent=5 // pred_check
        _
      $region30: #{tpu_custom_call.1} parent=5 // pred_check_branch
        %203 = sbr.rel (%p200) target = $region32
      $region31: #{tpu_custom_call.1} parent=5 // pred_region
        %s204 = ssub.s32 %s18, 1
        %s205 = sand.u32 %s45, 1
        %s206 = scalar_lea.sflag [#allocation4], %s205
        %s207 = sand.u32 %s45, 1
        %s208 = smul.addr %s207, 64
        %s209 = scalar_lea.vmem [#allocation3], %s208
        // Predicated region
        $region33: #{tpu_custom_call.1} parent=31 // pred_check
          %p210 = pneg %p58
        $region34: #{tpu_custom_call.1} parent=31 // pred_check_branch
          %212 = sbr.rel (%p210) target = $region36
        $region35: #{tpu_custom_call.1} parent=31 // pred_region
          %213 = dma.done %s206, 1024
        $region36: #{tpu_custom_call.1} parent=31 // pred_fallthru
          _
        %s214 = sand.u32 %s71, 1
        %s215 = scalar_lea.sflag [#allocation7], %s214
        %s216 = sand.u32 %s71, 1
        %s217 = smul.addr %s216, 192
        %s218 = scalar_lea.vmem [#allocation6], %s217
        // Predicated region
        $region37: #{tpu_custom_call.1} parent=31 // pred_check
          %p219 = pneg %p84
        $region38: #{tpu_custom_call.1} parent=31 // pred_check_branch
          %221 = sbr.rel (%p219) target = $region40
        $region39: #{tpu_custom_call.1} parent=31 // pred_region
          %222 = dma.done %s215, 3072
        $region40: #{tpu_custom_call.1} parent=31 // pred_fallthru
          _
        %s223 = sand.u32 %s45, 1
        %s224 = scalar_lea.sflag [#allocation4], %s223
        %s225 = sand.u32 %s45, 1
        %s226 = smul.addr %s225, 64
        %s227 = scalar_lea.vmem [#allocation3], %s226
        %p228 = pneg %p58
        %p229 = pneg %p55
        %s230 = sand.u32 %s71, 1
        %s231 = scalar_lea.sflag [#allocation7], %s230
        %s232 = sand.u32 %s71, 1
        %s233 = smul.addr %s232, 192
        %s234 = scalar_lea.vmem [#allocation6], %s233
        %p235 = pneg %p84
        %p236 = pneg %p81
        %p237 = pneg %p105
        %p238 = pneg %p102
        %p239 = pneg %p131
        %p240 = pneg %p128
        %s241 = sand.u32 %s118, 1
        %s242 = scalar_lea.sflag [#allocation5], %s241
        %s243 = sand.u32 %s118, 1
        %s244 = smul.addr %s243, 64
        %s245 = scalar_lea.vmem [#allocation8], %s244
        %s246 = smul.u32 16, %s27
        %s247 = smul.u32 16, %s28
        %s248 = smul.u32 16, %s27
        %p250 = scmp.eq.s32.totalorder %s28, 0
        // Predicated region
        $region41: #{tpu_custom_call.1} parent=31 // pred_check
          %p251 = pneg %p250
        $region42: #{tpu_custom_call.1} parent=31 // pred_check_branch
          %253 = sbr.rel (%p251) target = $region44
        $region43: #{tpu_custom_call.1} parent=31 // pred_region
          %254 = vst [vmem:[#allocation2] sm:$0xff] 0.0
          %255 = vst [vmem:[#allocation2 + $0x8] sm:$0xff] 0.0
          %256 = vst [vmem:[#allocation2 + $0x10] sm:$0xff] 0.0
          %257 = vst [vmem:[#allocation2 + $0x18] sm:$0xff] 0.0
          %258 = vst [vmem:[#allocation2 + $0x20] sm:$0xff] 0.0
          %259 = vst [vmem:[#allocation2 + $0x28] sm:$0xff] 0.0
          %260 = vst [vmem:[#allocation2 + $0x30] sm:$0xff] 0.0
          %261 = vst [vmem:[#allocation2 + $0x38] sm:$0xff] 0.0
          %262 = vst [vmem:[#allocation2 + $0x40] sm:$0xff] 0.0
          %263 = vst [vmem:[#allocation2 + $0x48] sm:$0xff] 0.0
          %264 = vst [vmem:[#allocation2 + $0x50] sm:$0xff] 0.0
          %265 = vst [vmem:[#allocation2 + $0x58] sm:$0xff] 0.0
          %266 = vst [vmem:[#allocation2 + $0x60] sm:$0xff] 0.0
          %267 = vst [vmem:[#allocation2 + $0x68] sm:$0xff] 0.0
          %268 = vst [vmem:[#allocation2 + $0x70] sm:$0xff] 0.0
          %269 = vst [vmem:[#allocation2 + $0x78] sm:$0xff] 0.0
          %270 = vst [vmem:[#allocation2 + $0x80] sm:$0xff] 0.0
          %271 = vst [vmem:[#allocation2 + $0x88] sm:$0xff] 0.0
          %272 = vst [vmem:[#allocation2 + $0x90] sm:$0xff] 0.0
          %273 = vst [vmem:[#allocation2 + $0x98] sm:$0xff] 0.0
          %274 = vst [vmem:[#allocation2 + $0xa0] sm:$0xff] 0.0
          %275 = vst [vmem:[#allocation2 + $0xa8] sm:$0xff] 0.0
          %276 = vst [vmem:[#allocation2 + $0xb0] sm:$0xff] 0.0
          %277 = vst [vmem:[#allocation2 + $0xb8] sm:$0xff] 0.0
          %278 = vst [vmem:[#allocation2 + $0xc0] sm:$0xff] 0.0
          %279 = vst [vmem:[#allocation2 + $0xc8] sm:$0xff] 0.0
          %280 = vst [vmem:[#allocation2 + $0xd0] sm:$0xff] 0.0
          %281 = vst [vmem:[#allocation2 + $0xd8] sm:$0xff] 0.0
          %282 = vst [vmem:[#allocation2 + $0xe0] sm:$0xff] 0.0
          %283 = vst [vmem:[#allocation2 + $0xe8] sm:$0xff] 0.0
          %284 = vst [vmem:[#allocation2 + $0xf0] sm:$0xff] 0.0
          %285 = vst [vmem:[#allocation2 + $0xf8] sm:$0xff] 0.0
          %286 = vst [vmem:[#allocation2 + $0x100] sm:$0xff] 0.0
          %287 = vst [vmem:[#allocation2 + $0x108] sm:$0xff] 0.0
          %288 = vst [vmem:[#allocation2 + $0x110] sm:$0xff] 0.0
          %289 = vst [vmem:[#allocation2 + $0x118] sm:$0xff] 0.0
          %290 = vst [vmem:[#allocation2 + $0x120] sm:$0xff] 0.0
          %291 = vst [vmem:[#allocation2 + $0x128] sm:$0xff] 0.0
          %292 = vst [vmem:[#allocation2 + $0x130] sm:$0xff] 0.0
          %293 = vst [vmem:[#allocation2 + $0x138] sm:$0xff] 0.0
          %294 = vst [vmem:[#allocation2 + $0x140] sm:$0xff] 0.0
          %295 = vst [vmem:[#allocation2 + $0x148] sm:$0xff] 0.0
          %296 = vst [vmem:[#allocation2 + $0x150] sm:$0xff] 0.0
          %297 = vst [vmem:[#allocation2 + $0x158] sm:$0xff] 0.0
          %298 = vst [vmem:[#allocation2 + $0x160] sm:$0xff] 0.0
          %299 = vst [vmem:[#allocation2 + $0x168] sm:$0xff] 0.0
          %300 = vst [vmem:[#allocation2 + $0x170] sm:$0xff] 0.0
          %301 = vst [vmem:[#allocation2 + $0x178] sm:$0xff] 0.0
        $region44: #{tpu_custom_call.1} parent=31 // pred_fallthru
          _
        %v302 = vld [vmem:[#allocation2] sm:$0xff]
        %v303 = vld [vmem:[#allocation2 + $0x8] sm:$0xff]
        %v304 = vld [vmem:[#allocation2 + $0x10] sm:$0xff]
        %v305 = vld [vmem:[#allocation2 + $0x18] sm:$0xff]
        %v306 = vld [vmem:[#allocation2 + $0x20] sm:$0xff]
        %v307 = vld [vmem:[#allocation2 + $0x28] sm:$0xff]
        %v308 = vld [vmem:[#allocation2 + $0x30] sm:$0xff]
        %v309 = vld [vmem:[#allocation2 + $0x38] sm:$0xff]
        %v310 = vld [vmem:[#allocation2 + $0x40] sm:$0xff]
        %v311 = vld [vmem:[#allocation2 + $0x48] sm:$0xff]
        %v312 = vld [vmem:[#allocation2 + $0x50] sm:$0xff]
        %v313 = vld [vmem:[#allocation2 + $0x58] sm:$0xff]
        %v314 = vld [vmem:[#allocation2 + $0x60] sm:$0xff]
        %v315 = vld [vmem:[#allocation2 + $0x68] sm:$0xff]
        %v316 = vld [vmem:[#allocation2 + $0x70] sm:$0xff]
        %v317 = vld [vmem:[#allocation2 + $0x78] sm:$0xff]
        %v318 = vld [vmem:[#allocation2 + $0x80] sm:$0xff]
        %v319 = vld [vmem:[#allocation2 + $0x88] sm:$0xff]
        %v320 = vld [vmem:[#allocation2 + $0x90] sm:$0xff]
        %v321 = vld [vmem:[#allocation2 + $0x98] sm:$0xff]
        %v322 = vld [vmem:[#allocation2 + $0xa0] sm:$0xff]
        %v323 = vld [vmem:[#allocation2 + $0xa8] sm:$0xff]
        %v324 = vld [vmem:[#allocation2 + $0xb0] sm:$0xff]
        %v325 = vld [vmem:[#allocation2 + $0xb8] sm:$0xff]
        %v326 = vld [vmem:[#allocation2 + $0xc0] sm:$0xff]
        %v327 = vld [vmem:[#allocation2 + $0xc8] sm:$0xff]
        %v328 = vld [vmem:[#allocation2 + $0xd0] sm:$0xff]
        %v329 = vld [vmem:[#allocation2 + $0xd8] sm:$0xff]
        %v330 = vld [vmem:[#allocation2 + $0xe0] sm:$0xff]
        %v331 = vld [vmem:[#allocation2 + $0xe8] sm:$0xff]
        %v332 = vld [vmem:[#allocation2 + $0xf0] sm:$0xff]
        %v333 = vld [vmem:[#allocation2 + $0xf8] sm:$0xff]
        %v334 = vld [vmem:[#allocation2 + $0x100] sm:$0xff]
        %v335 = vld [vmem:[#allocation2 + $0x108] sm:$0xff]
        %v336 = vld [vmem:[#allocation2 + $0x110] sm:$0xff]
        %v337 = vld [vmem:[#allocation2 + $0x118] sm:$0xff]
        %v338 = vld [vmem:[#allocation2 + $0x120] sm:$0xff]
        %v339 = vld [vmem:[#allocation2 + $0x128] sm:$0xff]
        %v340 = vld [vmem:[#allocation2 + $0x130] sm:$0xff]
        %v341 = vld [vmem:[#allocation2 + $0x138] sm:$0xff]
        %v342 = vld [vmem:[#allocation2 + $0x140] sm:$0xff]
        %v343 = vld [vmem:[#allocation2 + $0x148] sm:$0xff]
        %v344 = vld [vmem:[#allocation2 + $0x150] sm:$0xff]
        %v345 = vld [vmem:[#allocation2 + $0x158] sm:$0xff]
        %v346 = vld [vmem:[#allocation2 + $0x160] sm:$0xff]
        %v347 = vld [vmem:[#allocation2 + $0x168] sm:$0xff]
        %v348 = vld [vmem:[#allocation2 + $0x170] sm:$0xff]
        %v349 = vld [vmem:[#allocation2 + $0x178] sm:$0xff]
        %v350 = vld [vmem:[%s209] sm:$0xf]
        %v351 = vld [vmem:[%s209 + $0x4] sm:$0xf]
        %v352 = vld [vmem:[%s209 + $0x8] sm:$0xf]
        %v353 = vld [vmem:[%s209 + $0xc] sm:$0xf]
        %v354 = vld [vmem:[%s209 + $0x10] sm:$0xf]
        %v355 = vld [vmem:[%s209 + $0x14] sm:$0xf]
        %v356 = vld [vmem:[%s209 + $0x18] sm:$0xf]
        %v357 = vld [vmem:[%s209 + $0x1c] sm:$0xf]
        %v358 = vld [vmem:[%s209 + $0x20] sm:$0xf]
        %v359 = vld [vmem:[%s209 + $0x24] sm:$0xf]
        %v360 = vld [vmem:[%s209 + $0x28] sm:$0xf]
        %v361 = vld [vmem:[%s209 + $0x2c] sm:$0xf]
        %v362 = vld [vmem:[%s209 + $0x30] sm:$0xf]
        %v363 = vld [vmem:[%s209 + $0x34] sm:$0xf]
        %v364 = vld [vmem:[%s209 + $0x38] sm:$0xf]
        %v365 = vld [vmem:[%s209 + $0x3c] sm:$0xf]
        %v366 = vld [vmem:[%s218] sm:$0xff]
        %v367 = vld [vmem:[%s218 + $0x8] sm:$0xf]
        %v368 = vld [vmem:[%s218 + $0xc] sm:$0xff]
        %v369 = vld [vmem:[%s218 + $0x14] sm:$0xf]
        %v370 = vld [vmem:[%s218 + $0x18] sm:$0xff]
        %v371 = vld [vmem:[%s218 + $0x20] sm:$0xf]
        %v372 = vld [vmem:[%s218 + $0x24] sm:$0xff]
        %v373 = vld [vmem:[%s218 + $0x2c] sm:$0xf]
        %v374 = vld [vmem:[%s218 + $0x30] sm:$0xff]
        %v375 = vld [vmem:[%s218 + $0x38] sm:$0xf]
        %v376 = vld [vmem:[%s218 + $0x3c] sm:$0xff]
        %v377 = vld [vmem:[%s218 + $0x44] sm:$0xf]
        %v378 = vld [vmem:[%s218 + $0x48] sm:$0xff]
        %v379 = vld [vmem:[%s218 + $0x50] sm:$0xf]
        %v380 = vld [vmem:[%s218 + $0x54] sm:$0xff]
        %v381 = vld [vmem:[%s218 + $0x5c] sm:$0xf]
        %v382 = vld [vmem:[%s218 + $0x60] sm:$0xff]
        %v383 = vld [vmem:[%s218 + $0x68] sm:$0xf]
        %v384 = vld [vmem:[%s218 + $0x6c] sm:$0xff]
        %v385 = vld [vmem:[%s218 + $0x74] sm:$0xf]
        %v386 = vld [vmem:[%s218 + $0x78] sm:$0xff]
        %v387 = vld [vmem:[%s218 + $0x80] sm:$0xf]
        %v388 = vld [vmem:[%s218 + $0x84] sm:$0xff]
        %v389 = vld [vmem:[%s218 + $0x8c] sm:$0xf]
        %v390 = vld [vmem:[%s218 + $0x90] sm:$0xff]
        %v391 = vld [vmem:[%s218 + $0x98] sm:$0xf]
        %v392 = vld [vmem:[%s218 + $0x9c] sm:$0xff]
        %v393 = vld [vmem:[%s218 + $0xa4] sm:$0xf]
        %v394 = vld [vmem:[%s218 + $0xa8] sm:$0xff]
        %v395 = vld [vmem:[%s218 + $0xb0] sm:$0xf]
        %v396 = vld [vmem:[%s218 + $0xb4] sm:$0xff]
        %v397 = vld [vmem:[%s218 + $0xbc] sm:$0xf]
        %v414 = vunpack.c.l.b16 %v350
        %v415 = vunpack.c.l.b16 %v351
        %v416 = vunpack.c.l.b16 %v352
        %v417 = vunpack.c.l.b16 %v353
        %v418 = vunpack.c.l.b16 %v354
        %v419 = vunpack.c.l.b16 %v355
        %v420 = vunpack.c.l.b16 %v356
        %v421 = vunpack.c.l.b16 %v357
        %v422 = vunpack.c.l.b16 %v358
        %v423 = vunpack.c.l.b16 %v359
        %v424 = vunpack.c.l.b16 %v360
        %v425 = vunpack.c.l.b16 %v361
        %v426 = vunpack.c.l.b16 %v362
        %v427 = vunpack.c.l.b16 %v363
        %v428 = vunpack.c.l.b16 %v364
        %v429 = vunpack.c.l.b16 %v365
        %v430 = vpack.c.b16 %v415, %v414
        %v431 = vpack.c.b16 %v417, %v416
        %v432 = vpack.c.b16 %v419, %v418
        %v433 = vpack.c.b16 %v421, %v420
        %v434 = vpack.c.b16 %v423, %v422
        %v435 = vpack.c.b16 %v425, %v424
        %v436 = vpack.c.b16 %v427, %v426
        %v437 = vpack.c.b16 %v429, %v428
        %v478 = vunpack.c.l.b16 %v366
        %v479 = vunpack.c.h.b16 %v366
        %v480 = vunpack.c.l.b16 %v367
        %v481 = vunpack.c.l.b16 %v368
        %v482 = vunpack.c.h.b16 %v368
        %v483 = vunpack.c.l.b16 %v369
        %v484 = vunpack.c.l.b16 %v370
        %v485 = vunpack.c.h.b16 %v370
        %v486 = vunpack.c.l.b16 %v371
        %v487 = vunpack.c.l.b16 %v372
        %v488 = vunpack.c.h.b16 %v372
        %v489 = vunpack.c.l.b16 %v373
        %v490 = vunpack.c.l.b16 %v374
        %v491 = vunpack.c.h.b16 %v374
        %v492 = vunpack.c.l.b16 %v375
        %v493 = vunpack.c.l.b16 %v376
        %v494 = vunpack.c.h.b16 %v376
        %v495 = vunpack.c.l.b16 %v377
        %v496 = vunpack.c.l.b16 %v378
        %v497 = vunpack.c.h.b16 %v378
        %v498 = vunpack.c.l.b16 %v379
        %v499 = vunpack.c.l.b16 %v380
        %v500 = vunpack.c.h.b16 %v380
        %v501 = vunpack.c.l.b16 %v381
        %v502 = vunpack.c.l.b16 %v382
        %v503 = vunpack.c.h.b16 %v382
        %v504 = vunpack.c.l.b16 %v383
        %v505 = vunpack.c.l.b16 %v384
        %v506 = vunpack.c.h.b16 %v384
        %v507 = vunpack.c.l.b16 %v385
        %v508 = vunpack.c.l.b16 %v386
        %v509 = vunpack.c.h.b16 %v386
        %v510 = vunpack.c.l.b16 %v387
        %v511 = vunpack.c.l.b16 %v388
        %v512 = vunpack.c.h.b16 %v388
        %v513 = vunpack.c.l.b16 %v389
        %v514 = vunpack.c.l.b16 %v390
        %v515 = vunpack.c.h.b16 %v390
        %v516 = vunpack.c.l.b16 %v391
        %v517 = vunpack.c.l.b16 %v392
        %v518 = vunpack.c.h.b16 %v392
        %v519 = vunpack.c.l.b16 %v393
        %v520 = vunpack.c.l.b16 %v394
        %v521 = vunpack.c.h.b16 %v394
        %v522 = vunpack.c.l.b16 %v395
        %v523 = vunpack.c.l.b16 %v396
        %v524 = vunpack.c.h.b16 %v396
        %v525 = vunpack.c.l.b16 %v397
        %v526 = vpack.c.b16 %v481, %v478
        %v527 = vpack.c.b16 %v482, %v479
        %v528 = vpack.c.b16 %v483, %v480
        %v529 = vpack.c.b16 %v487, %v484
        %v530 = vpack.c.b16 %v488, %v485
        %v531 = vpack.c.b16 %v489, %v486
        %v532 = vpack.c.b16 %v493, %v490
        %v533 = vpack.c.b16 %v494, %v491
        %v534 = vpack.c.b16 %v495, %v492
        %v535 = vpack.c.b16 %v499, %v496
        %v536 = vpack.c.b16 %v500, %v497
        %v537 = vpack.c.b16 %v501, %v498
        %v538 = vpack.c.b16 %v505, %v502
        %v539 = vpack.c.b16 %v506, %v503
        %v540 = vpack.c.b16 %v507, %v504
        %v541 = vpack.c.b16 %v511, %v508
        %v542 = vpack.c.b16 %v512, %v509
        %v543 = vpack.c.b16 %v513, %v510
        %v544 = vpack.c.b16 %v517, %v514
        %v545 = vpack.c.b16 %v518, %v515
        %v546 = vpack.c.b16 %v519, %v516
        %v547 = vpack.c.b16 %v523, %v520
        %v548 = vpack.c.b16 %v524, %v521
        %v549 = vpack.c.b16 %v525, %v522
        %574 = vmatprep.subr.bf16.mxu0 %v548
        %575 = vmatpush1.bf16.msra.mxu0 %v547
        %576 = vmatprep.subr.bf16.mxu0 %v545
        %577 = vmatpush1.bf16.msra.mxu0 %v544
        %578 = vmatprep.subr.bf16.mxu0 %v542
        %579 = vmatpush1.bf16.msra.mxu0 %v541
        %580 = vmatprep.subr.bf16.mxu0 %v539
        %581 = vmatpush1.bf16.msra.mxu0 %v538
        %582 = vmatprep.subr.bf16.mxu0 %v536
        %583 = vmatpush1.bf16.msra.mxu0 %v535
        %584 = vmatprep.subr.bf16.mxu0 %v533
        %585 = vmatpush1.bf16.msra.mxu0 %v532
        %586 = vmatprep.subr.bf16.mxu0 %v530
        %587 = vmatpush1.bf16.msra.mxu0 %v529
        %588 = vmatprep.subr.bf16.mxu0 %v527
        %589 = vmatpush1.bf16.msra.mxu0 %v526
        %590 = vmatprep.subr.bf16.mxu0 0
        %591 = vmatpush2.bf16.msra.mxu0 0
        %592 = vmatprep.subr.bf16.mxu0 0
        %593 = vmatpush2.bf16.msra.mxu0 0
        %594 = vmatprep.subr.bf16.mxu0 0
        %595 = vmatpush2.bf16.msra.mxu0 0
        %596 = vmatprep.subr.bf16.mxu0 0
        %597 = vmatpush2.bf16.msra.mxu0 0
        %598 = vmatprep.subr.bf16.mxu0 0
        %599 = vmatpush2.bf16.msra.mxu0 0
        %600 = vmatprep.subr.bf16.mxu0 0
        %601 = vmatpush2.bf16.msra.mxu0 0
        %602 = vmatprep.subr.bf16.mxu0 0
        %603 = vmatpush2.bf16.msra.mxu0 0
        %604 = vmatprep.subr.bf16.mxu0 0
        %605 = vmatpush2.bf16.msra.mxu0 0
        %606 = vmatprep.mubr.bf16.mxu0 0
        %607 = vmatmul.mubr.bf16.gmra.mxu0 %v430
        %v608 = vpop.f32.mrf.mxu0
        %v609 = vadd.f32 0.0, %v608
        %v610 = vpop.f32.mrf.mxu0
        %v611 = vadd.f32 0.0, %v610
        %v612 = vpop.f32.mrf.mxu0
        %v613 = vadd.f32 0.0, %v612
        %v614 = vpop.f32.mrf.mxu0
        %v615 = vadd.f32 0.0, %v614
        %616 = vmatprep.mubr.bf16.mxu0 0
        %617 = vmatmul.mubr.bf16.gmra.mxu0 %v431
        %v618 = vpop.f32.mrf.mxu0
        %v619 = vadd.f32 0.0, %v618
        %v620 = vpop.f32.mrf.mxu0
        %v621 = vadd.f32 0.0, %v620
        %v622 = vpop.f32.mrf.mxu0
        %v623 = vadd.f32 0.0, %v622
        %v624 = vpop.f32.mrf.mxu0
        %v625 = vadd.f32 0.0, %v624
        %626 = vmatprep.mubr.bf16.mxu0 0
        %627 = vmatmul.mubr.bf16.gmra.mxu0 %v432
        %v628 = vpop.f32.mrf.mxu0
        %v629 = vadd.f32 0.0, %v628
        %v630 = vpop.f32.mrf.mxu0
        %v631 = vadd.f32 0.0, %v630
        %v632 = vpop.f32.mrf.mxu0
        %v633 = vadd.f32 0.0, %v632
        %v634 = vpop.f32.mrf.mxu0
        %v635 = vadd.f32 0.0, %v634
        %636 = vmatprep.mubr.bf16.mxu0 0
        %637 = vmatmul.mubr.bf16.gmra.mxu0 %v433
        %v638 = vpop.f32.mrf.mxu0
        %v639 = vadd.f32 0.0, %v638
        %v640 = vpop.f32.mrf.mxu0
        %v641 = vadd.f32 0.0, %v640
        %v642 = vpop.f32.mrf.mxu0
        %v643 = vadd.f32 0.0, %v642
        %v644 = vpop.f32.mrf.mxu0
        %v645 = vadd.f32 0.0, %v644
        %646 = vmatprep.mubr.bf16.mxu0 0
        %647 = vmatmul.mubr.bf16.gmra.mxu0 %v434
        %v648 = vpop.f32.mrf.mxu0
        %v649 = vadd.f32 0.0, %v648
        %v650 = vpop.f32.mrf.mxu0
        %v651 = vadd.f32 0.0, %v650
        %v652 = vpop.f32.mrf.mxu0
        %v653 = vadd.f32 0.0, %v652
        %v654 = vpop.f32.mrf.mxu0
        %v655 = vadd.f32 0.0, %v654
        %656 = vmatprep.mubr.bf16.mxu0 0
        %657 = vmatmul.mubr.bf16.gmra.mxu0 %v435
        %v658 = vpop.f32.mrf.mxu0
        %v659 = vadd.f32 0.0, %v658
        %v660 = vpop.f32.mrf.mxu0
        %v661 = vadd.f32 0.0, %v660
        %v662 = vpop.f32.mrf.mxu0
        %v663 = vadd.f32 0.0, %v662
        %v664 = vpop.f32.mrf.mxu0
        %v665 = vadd.f32 0.0, %v664
        %666 = vmatprep.mubr.bf16.mxu0 0
        %667 = vmatmul.mubr.bf16.gmra.mxu0 %v436
        %v668 = vpop.f32.mrf.mxu0
        %v669 = vadd.f32 0.0, %v668
        %v670 = vpop.f32.mrf.mxu0
        %v671 = vadd.f32 0.0, %v670
        %v672 = vpop.f32.mrf.mxu0
        %v673 = vadd.f32 0.0, %v672
        %v674 = vpop.f32.mrf.mxu0
        %v675 = vadd.f32 0.0, %v674
        %676 = vmatprep.mubr.bf16.mxu0 0
        %677 = vmatmul.mubr.bf16.gmra.mxu0 %v437
        %v678 = vpop.f32.mrf.mxu0
        %v679 = vadd.f32 0.0, %v678
        %v680 = vpop.f32.mrf.mxu0
        %v681 = vadd.f32 0.0, %v680
        %v682 = vpop.f32.mrf.mxu0
        %v683 = vadd.f32 0.0, %v682
        %v684 = vpop.f32.mrf.mxu0
        %v685 = vadd.f32 0.0, %v684
        %686 = vdwg.mxu0
        %687 = vmatprep.subr.bf16.mxu0 0
        %688 = vmatpush1.bf16.msra.mxu0 %v549
        %689 = vmatprep.subr.bf16.mxu0 0
        %690 = vmatpush1.bf16.msra.mxu0 %v546
        %691 = vmatprep.subr.bf16.mxu0 0
        %692 = vmatpush1.bf16.msra.mxu0 %v543
        %693 = vmatprep.subr.bf16.mxu0 0
        %694 = vmatpush1.bf16.msra.mxu0 %v540
        %695 = vmatprep.subr.bf16.mxu0 0
        %696 = vmatpush1.bf16.msra.mxu0 %v537
        %697 = vmatprep.subr.bf16.mxu0 0
        %698 = vmatpush1.bf16.msra.mxu0 %v534
        %699 = vmatprep.subr.bf16.mxu0 0
        %700 = vmatpush1.bf16.msra.mxu0 %v531
        %701 = vmatprep.subr.bf16.mxu0 0
        %702 = vmatpush1.bf16.msra.mxu0 %v528
        %703 = vmatprep.subr.bf16.mxu0 0
        %704 = vmatpush2.bf16.msra.mxu0 0
        %705 = vmatprep.subr.bf16.mxu0 0
        %706 = vmatpush2.bf16.msra.mxu0 0
        %707 = vmatprep.subr.bf16.mxu0 0
        %708 = vmatpush2.bf16.msra.mxu0 0
        %709 = vmatprep.subr.bf16.mxu0 0
        %710 = vmatpush2.bf16.msra.mxu0 0
        %711 = vmatprep.subr.bf16.mxu0 0
        %712 = vmatpush2.bf16.msra.mxu0 0
        %713 = vmatprep.subr.bf16.mxu0 0
        %714 = vmatpush2.bf16.msra.mxu0 0
        %715 = vmatprep.subr.bf16.mxu0 0
        %716 = vmatpush2.bf16.msra.mxu0 0
        %717 = vmatprep.subr.bf16.mxu0 0
        %718 = vmatpush2.bf16.msra.mxu0 0
        %719 = vmatprep.mubr.bf16.mxu0 0
        %720 = vmatmul.mubr.bf16.gmra.mxu0 %v430
        %v721 = vpop.f32.mrf.mxu0
        %v722 = vadd.f32 0.0, %v721
        %v723 = vpop.f32.mrf.mxu0
        %v724 = vpop.f32.mrf.mxu0
        %v725 = vadd.f32 0.0, %v724
        %v726 = vpop.f32.mrf.mxu0
        %727 = vmatprep.mubr.bf16.mxu0 0
        %728 = vmatmul.mubr.bf16.gmra.mxu0 %v431
        %v729 = vpop.f32.mrf.mxu0
        %v730 = vadd.f32 0.0, %v729
        %v731 = vpop.f32.mrf.mxu0
        %v732 = vpop.f32.mrf.mxu0
        %v733 = vadd.f32 0.0, %v732
        %v734 = vpop.f32.mrf.mxu0
        %735 = vmatprep.mubr.bf16.mxu0 0
        %736 = vmatmul.mubr.bf16.gmra.mxu0 %v432
        %v737 = vpop.f32.mrf.mxu0
        %v738 = vadd.f32 0.0, %v737
        %v739 = vpop.f32.mrf.mxu0
        %v740 = vpop.f32.mrf.mxu0
        %v741 = vadd.f32 0.0, %v740
        %v742 = vpop.f32.mrf.mxu0
        %743 = vmatprep.mubr.bf16.mxu0 0
        %744 = vmatmul.mubr.bf16.gmra.mxu0 %v433
        %v745 = vpop.f32.mrf.mxu0
        %v746 = vadd.f32 0.0, %v745
        %v747 = vpop.f32.mrf.mxu0
        %v748 = vpop.f32.mrf.mxu0
        %v749 = vadd.f32 0.0, %v748
        %v750 = vpop.f32.mrf.mxu0
        %751 = vmatprep.mubr.bf16.mxu0 0
        %752 = vmatmul.mubr.bf16.gmra.mxu0 %v434
        %v753 = vpop.f32.mrf.mxu0
        %v754 = vadd.f32 0.0, %v753
        %v755 = vpop.f32.mrf.mxu0
        %v756 = vpop.f32.mrf.mxu0
        %v757 = vadd.f32 0.0, %v756
        %v758 = vpop.f32.mrf.mxu0
        %759 = vmatprep.mubr.bf16.mxu0 0
        %760 = vmatmul.mubr.bf16.gmra.mxu0 %v435
        %v761 = vpop.f32.mrf.mxu0
        %v762 = vadd.f32 0.0, %v761
        %v763 = vpop.f32.mrf.mxu0
        %v764 = vpop.f32.mrf.mxu0
        %v765 = vadd.f32 0.0, %v764
        %v766 = vpop.f32.mrf.mxu0
        %767 = vmatprep.mubr.bf16.mxu0 0
        %768 = vmatmul.mubr.bf16.gmra.mxu0 %v436
        %v769 = vpop.f32.mrf.mxu0
        %v770 = vadd.f32 0.0, %v769
        %v771 = vpop.f32.mrf.mxu0
        %v772 = vpop.f32.mrf.mxu0
        %v773 = vadd.f32 0.0, %v772
        %v774 = vpop.f32.mrf.mxu0
        %775 = vmatprep.mubr.bf16.mxu0 0
        %776 = vmatmul.mubr.bf16.gmra.mxu0 %v437
        %v777 = vpop.f32.mrf.mxu0
        %v778 = vadd.f32 0.0, %v777
        %v779 = vpop.f32.mrf.mxu0
        %v780 = vpop.f32.mrf.mxu0
        %v781 = vadd.f32 0.0, %v780
        %v782 = vpop.f32.mrf.mxu0
        %783 = vdwg.mxu0
        %v784 = vadd.f32 %v302, %v609
        %v785 = vadd.f32 %v303, %v611
        %v786 = vadd.f32 %v304, %v722
        %v787 = vadd.f32 %v305, %v613
        %v788 = vadd.f32 %v306, %v615
        %v789 = vadd.f32 %v307, %v725
        %v790 = vadd.f32 %v308, %v619
        %v791 = vadd.f32 %v309, %v621
        %v792 = vadd.f32 %v310, %v730
        %v793 = vadd.f32 %v311, %v623
        %v794 = vadd.f32 %v312, %v625
        %v795 = vadd.f32 %v313, %v733
        %v796 = vadd.f32 %v314, %v629
        %v797 = vadd.f32 %v315, %v631
        %v798 = vadd.f32 %v316, %v738
        %v799 = vadd.f32 %v317, %v633
        %v800 = vadd.f32 %v318, %v635
        %v801 = vadd.f32 %v319, %v741
        %v802 = vadd.f32 %v320, %v639
        %v803 = vadd.f32 %v321, %v641
        %v804 = vadd.f32 %v322, %v746
        %v805 = vadd.f32 %v323, %v643
        %v806 = vadd.f32 %v324, %v645
        %v807 = vadd.f32 %v325, %v749
        %v808 = vadd.f32 %v326, %v649
        %v809 = vadd.f32 %v327, %v651
        %v810 = vadd.f32 %v328, %v754
        %v811 = vadd.f32 %v329, %v653
        %v812 = vadd.f32 %v330, %v655
        %v813 = vadd.f32 %v331, %v757
        %v814 = vadd.f32 %v332, %v659
        %v815 = vadd.f32 %v333, %v661
        %v816 = vadd.f32 %v334, %v762
        %v817 = vadd.f32 %v335, %v663
        %v818 = vadd.f32 %v336, %v665
        %v819 = vadd.f32 %v337, %v765
        %v820 = vadd.f32 %v338, %v669
        %v821 = vadd.f32 %v339, %v671
        %v822 = vadd.f32 %v340, %v770
        %v823 = vadd.f32 %v341, %v673
        %v824 = vadd.f32 %v342, %v675
        %v825 = vadd.f32 %v343, %v773
        %v826 = vadd.f32 %v344, %v679
        %v827 = vadd.f32 %v345, %v681
        %v828 = vadd.f32 %v346, %v778
        %v829 = vadd.f32 %v347, %v683
        %v830 = vadd.f32 %v348, %v685
        %v831 = vadd.f32 %v349, %v781
        %832 = vst [vmem:[#allocation2] sm:$0xff] %v784
        %833 = vst [vmem:[#allocation2 + $0x8] sm:$0xff] %v785
        %834 = vst [vmem:[#allocation2 + $0x10] sm:$0xff] %v786
        %835 = vst [vmem:[#allocation2 + $0x18] sm:$0xff] %v787
        %836 = vst [vmem:[#allocation2 + $0x20] sm:$0xff] %v788
        %837 = vst [vmem:[#allocation2 + $0x28] sm:$0xff] %v789
        %838 = vst [vmem:[#allocation2 + $0x30] sm:$0xff] %v790
        %839 = vst [vmem:[#allocation2 + $0x38] sm:$0xff] %v791
        %840 = vst [vmem:[#allocation2 + $0x40] sm:$0xff] %v792
        %841 = vst [vmem:[#allocation2 + $0x48] sm:$0xff] %v793
        %842 = vst [vmem:[#allocation2 + $0x50] sm:$0xff] %v794
        %843 = vst [vmem:[#allocation2 + $0x58] sm:$0xff] %v795
        %844 = vst [vmem:[#allocation2 + $0x60] sm:$0xff] %v796
        %845 = vst [vmem:[#allocation2 + $0x68] sm:$0xff] %v797
        %846 = vst [vmem:[#allocation2 + $0x70] sm:$0xff] %v798
        %847 = vst [vmem:[#allocation2 + $0x78] sm:$0xff] %v799
        %848 = vst [vmem:[#allocation2 + $0x80] sm:$0xff] %v800
        %849 = vst [vmem:[#allocation2 + $0x88] sm:$0xff] %v801
        %850 = vst [vmem:[#allocation2 + $0x90] sm:$0xff] %v802
        %851 = vst [vmem:[#allocation2 + $0x98] sm:$0xff] %v803
        %852 = vst [vmem:[#allocation2 + $0xa0] sm:$0xff] %v804
        %853 = vst [vmem:[#allocation2 + $0xa8] sm:$0xff] %v805
        %854 = vst [vmem:[#allocation2 + $0xb0] sm:$0xff] %v806
        %855 = vst [vmem:[#allocation2 + $0xb8] sm:$0xff] %v807
        %856 = vst [vmem:[#allocation2 + $0xc0] sm:$0xff] %v808
        %857 = vst [vmem:[#allocation2 + $0xc8] sm:$0xff] %v809
        %858 = vst [vmem:[#allocation2 + $0xd0] sm:$0xff] %v810
        %859 = vst [vmem:[#allocation2 + $0xd8] sm:$0xff] %v811
        %860 = vst [vmem:[#allocation2 + $0xe0] sm:$0xff] %v812
        %861 = vst [vmem:[#allocation2 + $0xe8] sm:$0xff] %v813
        %862 = vst [vmem:[#allocation2 + $0xf0] sm:$0xff] %v814
        %863 = vst [vmem:[#allocation2 + $0xf8] sm:$0xff] %v815
        %864 = vst [vmem:[#allocation2 + $0x100] sm:$0xff] %v816
        %865 = vst [vmem:[#allocation2 + $0x108] sm:$0xff] %v817
        %866 = vst [vmem:[#allocation2 + $0x110] sm:$0xff] %v818
        %867 = vst [vmem:[#allocation2 + $0x118] sm:$0xff] %v819
        %868 = vst [vmem:[#allocation2 + $0x120] sm:$0xff] %v820
        %869 = vst [vmem:[#allocation2 + $0x128] sm:$0xff] %v821
        %870 = vst [vmem:[#allocation2 + $0x130] sm:$0xff] %v822
        %871 = vst [vmem:[#allocation2 + $0x138] sm:$0xff] %v823
        %872 = vst [vmem:[#allocation2 + $0x140] sm:$0xff] %v824
        %873 = vst [vmem:[#allocation2 + $0x148] sm:$0xff] %v825
        %874 = vst [vmem:[#allocation2 + $0x150] sm:$0xff] %v826
        %875 = vst [vmem:[#allocation2 + $0x158] sm:$0xff] %v827
        %876 = vst [vmem:[#allocation2 + $0x160] sm:$0xff] %v828
        %877 = vst [vmem:[#allocation2 + $0x168] sm:$0xff] %v829
        %878 = vst [vmem:[#allocation2 + $0x170] sm:$0xff] %v830
        %879 = vst [vmem:[#allocation2 + $0x178] sm:$0xff] %v831
        %p880 = scmp.eq.s32.totalorder %s28, 1
        // Predicated region
        $region45: #{tpu_custom_call.1} parent=31 // pred_check
          %p881 = pneg %p880
        $region46: #{tpu_custom_call.1} parent=31 // pred_check_branch
          %883 = sbr.rel (%p881) target = $region48
        $region47: #{tpu_custom_call.1} parent=31 // pred_region
          %v884 = vld [vmem:[#allocation2] sm:$0xff]
          %v885 = vld [vmem:[#allocation2 + $0x8] sm:$0xff]
          %v886 = vld [vmem:[#allocation2 + $0x10] sm:$0xff]
          %v887 = vld [vmem:[#allocation2 + $0x18] sm:$0xff]
          %v888 = vld [vmem:[#allocation2 + $0x20] sm:$0xff]
          %v889 = vld [vmem:[#allocation2 + $0x28] sm:$0xff]
          %v890 = vld [vmem:[#allocation2 + $0x30] sm:$0xff]
          %v891 = vld [vmem:[#allocation2 + $0x38] sm:$0xff]
          %v892 = vld [vmem:[#allocation2 + $0x40] sm:$0xff]
          %v893 = vld [vmem:[#allocation2 + $0x48] sm:$0xff]
          %v894 = vld [vmem:[#allocation2 + $0x50] sm:$0xff]
          %v895 = vld [vmem:[#allocation2 + $0x58] sm:$0xff]
          %v896 = vld [vmem:[#allocation2 + $0x60] sm:$0xff]
          %v897 = vld [vmem:[#allocation2 + $0x68] sm:$0xff]
          %v898 = vld [vmem:[#allocation2 + $0x70] sm:$0xff]
          %v899 = vld [vmem:[#allocation2 + $0x78] sm:$0xff]
          %v900 = vld [vmem:[#allocation2 + $0x80] sm:$0xff]
          %v901 = vld [vmem:[#allocation2 + $0x88] sm:$0xff]
          %v902 = vld [vmem:[#allocation2 + $0x90] sm:$0xff]
          %v903 = vld [vmem:[#allocation2 + $0x98] sm:$0xff]
          %v904 = vld [vmem:[#allocation2 + $0xa0] sm:$0xff]
          %v905 = vld [vmem:[#allocation2 + $0xa8] sm:$0xff]
          %v906 = vld [vmem:[#allocation2 + $0xb0] sm:$0xff]
          %v907 = vld [vmem:[#allocation2 + $0xb8] sm:$0xff]
          %v908 = vld [vmem:[#allocation2 + $0xc0] sm:$0xff]
          %v909 = vld [vmem:[#allocation2 + $0xc8] sm:$0xff]
          %v910 = vld [vmem:[#allocation2 + $0xd0] sm:$0xff]
          %v911 = vld [vmem:[#allocation2 + $0xd8] sm:$0xff]
          %v912 = vld [vmem:[#allocation2 + $0xe0] sm:$0xff]
          %v913 = vld [vmem:[#allocation2 + $0xe8] sm:$0xff]
          %v914 = vld [vmem:[#allocation2 + $0xf0] sm:$0xff]
          %v915 = vld [vmem:[#allocation2 + $0xf8] sm:$0xff]
          %v916 = vld [vmem:[#allocation2 + $0x100] sm:$0xff]
          %v917 = vld [vmem:[#allocation2 + $0x108] sm:$0xff]
          %v918 = vld [vmem:[#allocation2 + $0x110] sm:$0xff]
          %v919 = vld [vmem:[#allocation2 + $0x118] sm:$0xff]
          %v920 = vld [vmem:[#allocation2 + $0x120] sm:$0xff]
          %v921 = vld [vmem:[#allocation2 + $0x128] sm:$0xff]
          %v922 = vld [vmem:[#allocation2 + $0x130] sm:$0xff]
          %v923 = vld [vmem:[#allocation2 + $0x138] sm:$0xff]
          %v924 = vld [vmem:[#allocation2 + $0x140] sm:$0xff]
          %v925 = vld [vmem:[#allocation2 + $0x148] sm:$0xff]
          %v926 = vld [vmem:[#allocation2 + $0x150] sm:$0xff]
          %v927 = vld [vmem:[#allocation2 + $0x158] sm:$0xff]
          %v928 = vld [vmem:[#allocation2 + $0x160] sm:$0xff]
          %v929 = vld [vmem:[#allocation2 + $0x168] sm:$0xff]
          %v930 = vld [vmem:[#allocation2 + $0x170] sm:$0xff]
          %v931 = vld [vmem:[#allocation2 + $0x178] sm:$0xff]
          %v932 = vld [vmem:[%s2] sm:$0x7]
          %v934 = vlaneseq
          %v935 = vshrl.u32 %v934, 7
          %v936 = vsub.s32 0, %v935
          %v937 = vrot.slane %v932, %v936
          %v938 = vlaneseq
          %v939 = vshrl.u32 %v938, 7
          %v940 = vsub.s32 1, %v939
          %v941 = vrot.slane %v932, %v940
          %v942 = vlaneseq
          %v943 = vshrl.u32 %v942, 7
          %v944 = vsub.s32 2, %v943
          %v945 = vrot.slane %v932, %v944
          %v949 = vadd.f32 %v884, %v937
          %v950 = vadd.f32 %v885, %v941
          %v951 = vadd.f32 %v886, %v945
          %v952 = vadd.f32 %v887, %v937
          %v953 = vadd.f32 %v888, %v941
          %v954 = vadd.f32 %v889, %v945
          %v955 = vadd.f32 %v890, %v937
          %v956 = vadd.f32 %v891, %v941
          %v957 = vadd.f32 %v892, %v945
          %v958 = vadd.f32 %v893, %v937
          %v959 = vadd.f32 %v894, %v941
          %v960 = vadd.f32 %v895, %v945
          %v961 = vadd.f32 %v896, %v937
          %v962 = vadd.f32 %v897, %v941
          %v963 = vadd.f32 %v898, %v945
          %v964 = vadd.f32 %v899, %v937
          %v965 = vadd.f32 %v900, %v941
          %v966 = vadd.f32 %v901, %v945
          %v967 = vadd.f32 %v902, %v937
          %v968 = vadd.f32 %v903, %v941
          %v969 = vadd.f32 %v904, %v945
          %v970 = vadd.f32 %v905, %v937
          %v971 = vadd.f32 %v906, %v941
          %v972 = vadd.f32 %v907, %v945
          %v973 = vadd.f32 %v908, %v937
          %v974 = vadd.f32 %v909, %v941
          %v975 = vadd.f32 %v910, %v945
          %v976 = vadd.f32 %v911, %v937
          %v977 = vadd.f32 %v912, %v941
          %v978 = vadd.f32 %v913, %v945
          %v979 = vadd.f32 %v914, %v937
          %v980 = vadd.f32 %v915, %v941
          %v981 = vadd.f32 %v916, %v945
          %v982 = vadd.f32 %v917, %v937
          %v983 = vadd.f32 %v918, %v941
          %v984 = vadd.f32 %v919, %v945
          %v985 = vadd.f32 %v920, %v937
          %v986 = vadd.f32 %v921, %v941
          %v987 = vadd.f32 %v922, %v945
          %v988 = vadd.f32 %v923, %v937
          %v989 = vadd.f32 %v924, %v941
          %v990 = vadd.f32 %v925, %v945
          %v991 = vadd.f32 %v926, %v937
          %v992 = vadd.f32 %v927, %v941
          %v993 = vadd.f32 %v928, %v945
          %v994 = vadd.f32 %v929, %v937
          %v995 = vadd.f32 %v930, %v941
          %v996 = vadd.f32 %v931, %v945
          %v997 = vtanh.pop %v949
          %v998 = vtanh.pop %v950
          %v999 = vtanh.pop %v951
          %v1000 = vtanh.pop %v952
          %v1001 = vtanh.pop %v953
          %v1002 = vtanh.pop %v954
          %v1003 = vtanh.pop %v955
          %v1004 = vtanh.pop %v956
          %v1005 = vtanh.pop %v957
          %v1006 = vtanh.pop %v958
          %v1007 = vtanh.pop %v959
          %v1008 = vtanh.pop %v960
          %v1009 = vtanh.pop %v961
          %v1010 = vtanh.pop %v962
          %v1011 = vtanh.pop %v963
          %v1012 = vtanh.pop %v964
          %v1013 = vtanh.pop %v965
          %v1014 = vtanh.pop %v966
          %v1015 = vtanh.pop %v967
          %v1016 = vtanh.pop %v968
          %v1017 = vtanh.pop %v969
          %v1018 = vtanh.pop %v970
          %v1019 = vtanh.pop %v971
          %v1020 = vtanh.pop %v972
          %v1021 = vtanh.pop %v973
          %v1022 = vtanh.pop %v974
          %v1023 = vtanh.pop %v975
          %v1024 = vtanh.pop %v976
          %v1025 = vtanh.pop %v977
          %v1026 = vtanh.pop %v978
          %v1027 = vtanh.pop %v979
          %v1028 = vtanh.pop %v980
          %v1029 = vtanh.pop %v981
          %v1030 = vtanh.pop %v982
          %v1031 = vtanh.pop %v983
          %v1032 = vtanh.pop %v984
          %v1033 = vtanh.pop %v985
          %v1034 = vtanh.pop %v986
          %v1035 = vtanh.pop %v987
          %v1036 = vtanh.pop %v988
          %v1037 = vtanh.pop %v989
          %v1038 = vtanh.pop %v990
          %v1039 = vtanh.pop %v991
          %v1040 = vtanh.pop %v992
          %v1041 = vtanh.pop %v993
          %v1042 = vtanh.pop %v994
          %v1043 = vtanh.pop %v995
          %v1044 = vtanh.pop %v996
          %v1045 = vmul.f32 %v997, %v998
          %v1046 = vmul.f32 %v1000, %v1001
          %v1047 = vmul.f32 %v1003, %v1004
          %v1048 = vmul.f32 %v1006, %v1007
          %v1049 = vmul.f32 %v1009, %v1010
          %v1050 = vmul.f32 %v1012, %v1013
          %v1051 = vmul.f32 %v1015, %v1016
          %v1052 = vmul.f32 %v1018, %v1019
          %v1053 = vmul.f32 %v1021, %v1022
          %v1054 = vmul.f32 %v1024, %v1025
          %v1055 = vmul.f32 %v1027, %v1028
          %v1056 = vmul.f32 %v1030, %v1031
          %v1057 = vmul.f32 %v1033, %v1034
          %v1058 = vmul.f32 %v1036, %v1037
          %v1059 = vmul.f32 %v1039, %v1040
          %v1060 = vmul.f32 %v1042, %v1043
          %v1061 = vmul.f32 %v1045, %v999
          %v1062 = vmul.f32 %v1046, %v1002
          %v1063 = vmul.f32 %v1047, %v1005
          %v1064 = vmul.f32 %v1048, %v1008
          %v1065 = vmul.f32 %v1049, %v1011
          %v1066 = vmul.f32 %v1050, %v1014
          %v1067 = vmul.f32 %v1051, %v1017
          %v1068 = vmul.f32 %v1052, %v1020
          %v1069 = vmul.f32 %v1053, %v1023
          %v1070 = vmul.f32 %v1054, %v1026
          %v1071 = vmul.f32 %v1055, %v1029
          %v1072 = vmul.f32 %v1056, %v1032
          %v1073 = vmul.f32 %v1057, %v1035
          %v1074 = vmul.f32 %v1058, %v1038
          %v1075 = vmul.f32 %v1059, %v1041
          %v1076 = vmul.f32 %v1060, %v1044
          %v1077 = vpack.c.bf16 %v1062, %v1061
          %v1078 = vpack.c.bf16 %v1064, %v1063
          %v1079 = vpack.c.bf16 %v1066, %v1065
          %v1080 = vpack.c.bf16 %v1068, %v1067
          %v1081 = vpack.c.bf16 %v1070, %v1069
          %v1082 = vpack.c.bf16 %v1072, %v1071
          %v1083 = vpack.c.bf16 %v1074, %v1073
          %v1084 = vpack.c.bf16 %v1076, %v1075
          %v1093 = vunpack.c.l.b16 %v1077
          %v1094 = vunpack.c.h.b16 %v1077
          %v1095 = vunpack.c.l.b16 %v1078
          %v1096 = vunpack.c.h.b16 %v1078
          %v1097 = vunpack.c.l.b16 %v1079
          %v1098 = vunpack.c.h.b16 %v1079
          %v1099 = vunpack.c.l.b16 %v1080
          %v1100 = vunpack.c.h.b16 %v1080
          %v1101 = vunpack.c.l.b16 %v1081
          %v1102 = vunpack.c.h.b16 %v1081
          %v1103 = vunpack.c.l.b16 %v1082
          %v1104 = vunpack.c.h.b16 %v1082
          %v1105 = vunpack.c.l.b16 %v1083
          %v1106 = vunpack.c.h.b16 %v1083
          %v1107 = vunpack.c.l.b16 %v1084
          %v1108 = vunpack.c.h.b16 %v1084
          %v1109 = vpack.c.b16 %v1093, %v1093
          %v1110 = vpack.c.b16 %v1094, %v1094
          %v1111 = vpack.c.b16 %v1095, %v1095
          %v1112 = vpack.c.b16 %v1096, %v1096
          %v1113 = vpack.c.b16 %v1097, %v1097
          %v1114 = vpack.c.b16 %v1098, %v1098
          %v1115 = vpack.c.b16 %v1099, %v1099
          %v1116 = vpack.c.b16 %v1100, %v1100
          %v1117 = vpack.c.b16 %v1101, %v1101
          %v1118 = vpack.c.b16 %v1102, %v1102
          %v1119 = vpack.c.b16 %v1103, %v1103
          %v1120 = vpack.c.b16 %v1104, %v1104
          %v1121 = vpack.c.b16 %v1105, %v1105
          %v1122 = vpack.c.b16 %v1106, %v1106
          %v1123 = vpack.c.b16 %v1107, %v1107
          %v1124 = vpack.c.b16 %v1108, %v1108
          %1141 = vst [vmem:[%s245] sm:$0xf] %v1109
          %1142 = vst [vmem:[%s245 + $0x4] sm:$0xf] %v1110
          %1143 = vst [vmem:[%s245 + $0x8] sm:$0xf] %v1111
          %1144 = vst [vmem:[%s245 + $0xc] sm:$0xf] %v1112
          %1145 = vst [vmem:[%s245 + $0x10] sm:$0xf] %v1113
          %1146 = vst [vmem:[%s245 + $0x14] sm:$0xf] %v1114
          %1147 = vst [vmem:[%s245 + $0x18] sm:$0xf] %v1115
          %1148 = vst [vmem:[%s245 + $0x1c] sm:$0xf] %v1116
          %1149 = vst [vmem:[%s245 + $0x20] sm:$0xf] %v1117
          %1150 = vst [vmem:[%s245 + $0x24] sm:$0xf] %v1118
          %1151 = vst [vmem:[%s245 + $0x28] sm:$0xf] %v1119
          %1152 = vst [vmem:[%s245 + $0x2c] sm:$0xf] %v1120
          %1153 = vst [vmem:[%s245 + $0x30] sm:$0xf] %v1121
          %1154 = vst [vmem:[%s245 + $0x34] sm:$0xf] %v1122
          %1155 = vst [vmem:[%s245 + $0x38] sm:$0xf] %v1123
          %1156 = vst [vmem:[%s245 + $0x3c] sm:$0xf] %v1124
        $region48: #{tpu_custom_call.1} parent=31 // pred_fallthru
          _
        %s1157 = sand.u32 %s118, 1
        %s1158 = scalar_lea.sflag [#allocation5], %s1157
        %s1159 = sand.u32 %s118, 1
        %s1160 = smul.addr %s1159, 64
        %s1161 = scalar_lea.vmem [#allocation8], %s1160
        // Predicated region
        $region49: #{tpu_custom_call.1} parent=31 // pred_check
          %p1162 = pneg %p128
        $region50: #{tpu_custom_call.1} parent=31 // pred_check_branch
          %1164 = sbr.rel (%p1162) target = $region52
        $region51: #{tpu_custom_call.1} parent=31 // pred_region
          %s1165 = smul.u32 16, %s27
          %s1167 = ssub.s32 1024, 1024
          %1168 = vsyncadd %s1158, %s1167
          %s1169 = smul.addr %s1165, 64
          %s1170 = scalar_lea.hbm %s3, %s1169
          %s1171 = sshll.u32 %s1161, 4
          %s1172 = int_to_ptr.vmem [resolvable:$true] %s1171
          %1177 = dma.vmem_to_hbm [thread:$0]  %s1172, 1024, %s1170, %s1158, 64, 64, 4
        $region52: #{tpu_custom_call.1} parent=31 // pred_fallthru
          _
      $region32: #{tpu_custom_call.1} parent=5 // pred_fallthru
        _
      %p1178 = scmp.le.s32.totalorder 2, %s18
      // Predicated region
      $region53: #{tpu_custom_call.1} parent=5 // pred_check
        %p1179 = pneg %p1178
      $region54: #{tpu_custom_call.1} parent=5 // pred_check_branch
        %1181 = sbr.rel (%p1179) target = $region56
      $region55: #{tpu_custom_call.1} parent=5 // pred_region
        %s1182 = ssub.s32 %s18, 2
        // Predicated region
        $region57: #{tpu_custom_call.1} parent=55 // pred_check
          %p1183 = pneg %p134
        $region58: #{tpu_custom_call.1} parent=55 // pred_check_branch
          %1185 = sbr.rel (%p1183) target = $region60
        $region59: #{tpu_custom_call.1} parent=55 // pred_region
          %s1186 = sand.u32 %s119, 1
          %s1187 = scalar_lea.sflag [#allocation5], %s1186
          %s1188 = sand.u32 %s119, 1
          %s1189 = smul.addr %s1188, 64
          %s1190 = scalar_lea.vmem [#allocation8], %s1189
          %1191 = dma.done %s1187, 1024
        $region60: #{tpu_custom_call.1} parent=55 // pred_fallthru
          _
      $region56: #{tpu_custom_call.1} parent=5 // pred_fallthru
        _
    $region6: #{tpu_custom_call.1} parent=1 // loop_footer
      %s22 = sadd.s32 1, %s18
    $region7: #{tpu_custom_call.1} parent=1 // loop_footer_branch
      %17 = sbr.rel target = $region3
    $region8: #{tpu_custom_call.1} parent=1 // loop_exit
      _
    %1192 = vsyncpa [#allocation4], 1
    %s1193 = scalar_lea.sflag [#allocation4], 1
    %1194 = vsyncpa %s1193, 1
    %1195 = vsyncpa [#allocation7], 1
    %s1196 = scalar_lea.sflag [#allocation7], 1
    %1197 = vsyncpa %s1196, 1
    %1198 = vsyncpa [#allocation5], 1
    %s1199 = scalar_lea.sflag [#allocation5], 1
    %1200 = vsyncpa %s1199, 1

</llo_original>
